<compile_context>
chip_gen: v7x
topology: tpu7x:2x2x1
jax: 0.10.0
libtpu: 0.0.40
codegen_flags: <defaults>
</compile_context>

<pallas_src>
import functools

import jax
import jax.numpy as jnp
from jax.experimental import pallas as pl
from jax.experimental.pallas import tpu as pltpu

EPS = 1e-6
LANES = 128
SUBLANES = 8
MAX_BLOCK_ROWS = 1024            # (1024, 128) f32 = 512 KiB per input block
ALIGN = SUBLANES * LANES         # 1024 elements -> rows always a multiple of 8


def _l1_loss_kernel(pred_ref, gt_ref, mask_ref, num_ref, den_ref, *,
                    block_rows, per_shard, valid_rows):
    s = pl.program_id(0)         # shard axis ("parallel", megacore on v7x)
    i = pl.program_id(1)         # reduction axis ("arbitrary")

    # Zero this shard's accumulator slot at the start of its reduction.
    @pl.when(i == 0)
    def _():
        num_ref[...] = jnp.zeros_like(num_ref)
        den_ref[...] = jnp.zeros_like(den_ref)

    p = pred_ref[...].astype(jnp.float32)
    g = gt_ref[...].astype(jnp.float32)
    m = mask_ref[...].astype(jnp.float32)

    # Logical (unclamped) block index. Rows at/after `valid_rows` belong to the
    # ragged last block or to redundant shard-tail blocks (whose DMA index is
    # clamped in the index_map) and must contribute zero.
    blk = s * per_shard + i
    row0 = blk * block_rows
    row_ids = row0 + jax.lax.broadcasted_iota(jnp.int32, (block_rows, LANES), 0)
    valid = row_ids < valid_rows

    num_c = jnp.where(valid, jnp.abs(p - g) * m, 0.0)
    den_c = jnp.where(valid, m, 0.0)

    # Fold the block to one (8, 128) tile per quantity with pure VPU adds
    # (grouped-sublane reshape, no cross-lane movement). The scalar reduce of
    # these partials happens once, outside the kernel.
    groups = block_rows // SUBLANES
    num_ref[...] += num_c.reshape(groups, SUBLANES, LANES).sum(axis=0)[None]
    den_ref[...] += den_c.reshape(groups, SUBLANES, LANES).sum(axis=0)[None]


@jax.jit
def l1_loss(pred, gt, train_mask):
    # Elementwise op + full reduction => layout-free: view as a lane-dense slab.
    # Keep native dtypes (bf16 pred/gt, bool/int8 mask all fine); cast in-kernel.
    pred_f = pred.reshape(-1)
    gt_f = gt.reshape(-1)
    mask_f = train_mask.reshape(-1)

    n = pred_f.shape[0]
    n_pad = ((n + ALIGN - 1) // ALIGN) * ALIGN
    pad = n_pad - n
    if pad:
        # Only unaligned element counts pay this copy (typical NCHW sizes skip
        # it). Zero-padded mask => padded elements add 0 to both num and den.
        pred_f = jnp.pad(pred_f, (0, pad))
        gt_f = jnp.pad(gt_f, (0, pad))
        mask_f = jnp.pad(mask_f, (0, pad))

    rows = n_pad // LANES                      # multiple of 8
    pred2 = pred_f.reshape(rows, LANES)
    gt2 = gt_f.reshape(rows, LANES)
    mask2 = mask_f.reshape(rows, LANES)

    block_rows = min(MAX_BLOCK_ROWS, rows)     # multiple of 8 by construction
    nb = pl.cdiv(rows, block_rows)             # number of row-blocks
    num_shards = 2 if nb >= 2 else 1           # split across v7x's 2 TCs
    per_shard = pl.cdiv(nb, num_shards)

    def in_map(s, i):
        # Clamp so the DMA stays in-bounds; redundant tail blocks are fully
        # masked out in-kernel via the row-index check.
        return (jnp.minimum(s * per_shard + i, nb - 1), 0)

    tile_spec = pl.BlockSpec((block_rows, LANES), in_map)
    acc_spec = pl.BlockSpec((1, SUBLANES, LANES), lambda s, i: (s, 0, 0))

    kernel = functools.partial(
        _l1_loss_kernel,
        block_rows=block_rows, per_shard=per_shard, valid_rows=rows)

    num_p, den_p = pl.pallas_call(
        kernel,
        out_shape=(
            jax.ShapeDtypeStruct((num_shards, SUBLANES, LANES), jnp.float32),
            jax.ShapeDtypeStruct((num_shards, SUBLANES, LANES), jnp.float32),
        ),
        grid_spec=pltpu.PrefetchScalarGridSpec(
            num_scalar_prefetch=0,
            grid=(num_shards, per_shard),
            in_specs=[tile_spec, tile_spec, tile_spec],
            out_specs=[acc_spec, acc_spec],
        ),
        compiler_params=pltpu.CompilerParams(
            dimension_semantics=("parallel", "arbitrary"),
        ),
    )(pred2, gt2, mask2)

    num = jnp.sum(num_p)
    den = jnp.sum(den_p)
    return (num / (den + EPS)).astype(jnp.float32)


if __name__ == "__main__":
    key = jax.random.PRNGKey(0)
    k1, k2, k3 = jax.random.split(key, 3)

    shape = (2, 4, 16, 16)  # NCHW, as in the PyTorch module
    pred = jax.random.normal(k1, shape, dtype=jnp.float32)
    gt = jax.random.normal(k2, shape, dtype=jnp.float32)
    train_mask = (jax.random.uniform(k3, shape) > 0.5).astype(jnp.float32)

    loss = jax.block_until_ready(l1_loss(pred, gt, train_mask))

    # Reference check in plain JAX.
    ref = (jnp.abs(pred - gt) * train_mask).sum() / (train_mask.sum() + EPS)
    assert jnp.allclose(loss, ref, rtol=1e-5, atol=1e-6), (loss, ref)

    print("KERNEL_OK")
</pallas_src>

<mosaic_0001>
module attributes {stable_mosaic.version = 11 : i64} {
  func.func @_l1_loss_kernel(%arg0: i32, %arg1: i32, %arg2: memref<16x128xf32, #tpu.memory_space<vmem>>, %arg3: memref<16x128xf32, #tpu.memory_space<vmem>>, %arg4: memref<16x128xf32, #tpu.memory_space<vmem>>, %arg5: memref<1x8x128xf32, #tpu.memory_space<vmem>>, %arg6: memref<1x8x128xf32, #tpu.memory_space<vmem>>) attributes {dimension_semantics = [#tpu.dimension_semantics<parallel>, #tpu.dimension_semantics<arbitrary>], iteration_bounds = array<i64: 1, 1>, scalar_prefetch = 0 : i64, scratch_operands = 0 : i64, tpu.core_type = #tpu.core_type<tc>, window_params = [{transform_indices = @transform_0, window_bounds = array<i64: 16, 128>}, {transform_indices = @transform_1, window_bounds = array<i64: 16, 128>}, {transform_indices = @transform_2, window_bounds = array<i64: 16, 128>}, {transform_indices = @transform_3, window_bounds = array<i64: 1, 8, 128>}, {transform_indices = @transform_4, window_bounds = array<i64: 1, 8, 128>}]} {
    %c0_i32 = arith.constant 0 : i32
    %0 = arith.cmpi eq, %arg1, %c0_i32 : i32
    %1 = arith.extui %0 : i1 to i32
    %c0_i32_0 = arith.constant 0 : i32
    %2 = arith.cmpi ne, %1, %c0_i32_0 : i32
    scf.if %2 {
      %cst_22 = arith.constant 0.000000e+00 : f32
      %33 = vector.broadcast %cst_22 : f32 to vector<1x8x128xf32>
      %c0_23 = arith.constant 0 : index
      %c0_24 = arith.constant 0 : index
      %c0_25 = arith.constant 0 : index
      %34 = vector.load %arg5[%c0_23, %c0_24, %c0_25] : memref<1x8x128xf32, #tpu.memory_space<vmem>>, vector<1x8x128xf32>
      tpu.vector_store %arg5[%c0_23, %c0_24, %c0_25], %33 {strides = array<i32>} : memref<1x8x128xf32, #tpu.memory_space<vmem>>, vector<1x8x128xf32>,
      %cst_26 = arith.constant 0.000000e+00 : f32
      %35 = vector.broadcast %cst_26 : f32 to vector<1x8x128xf32>
      %c0_27 = arith.constant 0 : index
      %c0_28 = arith.constant 0 : index
      %c0_29 = arith.constant 0 : index
      %36 = vector.load %arg6[%c0_27, %c0_28, %c0_29] : memref<1x8x128xf32, #tpu.memory_space<vmem>>, vector<1x8x128xf32>
      tpu.vector_store %arg6[%c0_27, %c0_28, %c0_29], %35 {strides = array<i32>} : memref<1x8x128xf32, #tpu.memory_space<vmem>>, vector<1x8x128xf32>,
    } else {
    }
    %c0 = arith.constant 0 : index
    %c0_1 = arith.constant 0 : index
    %3 = vector.load %arg2[%c0, %c0_1] : memref<16x128xf32, #tpu.memory_space<vmem>>, vector<16x128xf32>
    %c0_2 = arith.constant 0 : index
    %c0_3 = arith.constant 0 : index
    %4 = vector.load %arg3[%c0_2, %c0_3] : memref<16x128xf32, #tpu.memory_space<vmem>>, vector<16x128xf32>
    %c0_4 = arith.constant 0 : index
    %c0_5 = arith.constant 0 : index
    %5 = vector.load %arg4[%c0_4, %c0_5] : memref<16x128xf32, #tpu.memory_space<vmem>>, vector<16x128xf32>
    %c1_i32 = arith.constant 1 : i32
    %6 = arith.muli %arg0, %c1_i32 : i32
    %7 = arith.addi %6, %arg1 : i32
    %c16_i32 = arith.constant 16 : i32
    %8 = arith.muli %7, %c16_i32 : i32
    %9 = tpu.iota {dimensions = array<i32: 0>} : vector<16x128xi32>
    %10 = vector.broadcast %8 : i32 to vector<16x128xi32>
    %11 = arith.addi %10, %9 : vector<16x128xi32>
    %c16_i32_6 = arith.constant 16 : i32
    %12 = vector.broadcast %c16_i32_6 : i32 to vector<16x128xi32>
    %13 = arith.cmpi slt, %11, %12 : vector<16x128xi32>
    %14 = arith.subf %3, %4 : vector<16x128xf32>
    %15 = math.absf %14 : vector<16x128xf32>
    %16 = arith.mulf %15, %5 : vector<16x128xf32>
    %cst = arith.constant 0.000000e+00 : f32
    %17 = vector.broadcast %cst : f32 to vector<16x128xf32>
    %18 = arith.select %13, %16, %17 : vector<16x128xi1>, vector<16x128xf32>
    %cst_7 = arith.constant 0.000000e+00 : f32
    %19 = vector.broadcast %cst_7 : f32 to vector<16x128xf32>
    %20 = arith.select %13, %5, %19 : vector<16x128xi1>, vector<16x128xf32>
    %c0_8 = arith.constant 0 : index
    %c0_9 = arith.constant 0 : index
    %c0_10 = arith.constant 0 : index
    %21 = vector.load %arg5[%c0_8, %c0_9, %c0_10] : memref<1x8x128xf32, #tpu.memory_space<vmem>>, vector<1x8x128xf32>
    %22 = vector.shape_cast %18 : vector<16x128xf32> to vector<2x8x128xf32>
    %cst_11 = arith.constant dense<0.000000e+00> : vector<8x128xf32>
    %23 = vector.multi_reduction <add>, %22, %cst_11 [0] : vector<2x8x128xf32> to vector<8x128xf32>
    %24 = vector.shape_cast %23 : vector<8x128xf32> to vector<1x8x128xf32>
    %25 = arith.addf %21, %24 : vector<1x8x128xf32>
    %c0_12 = arith.constant 0 : index
    %c0_13 = arith.constant 0 : index
    %c0_14 = arith.constant 0 : index
    %26 = vector.load %arg5[%c0_12, %c0_13, %c0_14] : memref<1x8x128xf32, #tpu.memory_space<vmem>>, vector<1x8x128xf32>
    tpu.vector_store %arg5[%c0_12, %c0_13, %c0_14], %25 {strides = array<i32>} : memref<1x8x128xf32, #tpu.memory_space<vmem>>, vector<1x8x128xf32>,
    %c0_15 = arith.constant 0 : index
    %c0_16 = arith.constant 0 : index
    %c0_17 = arith.constant 0 : index
    %27 = vector.load %arg6[%c0_15, %c0_16, %c0_17] : memref<1x8x128xf32, #tpu.memory_space<vmem>>, vector<1x8x128xf32>
    %28 = vector.shape_cast %20 : vector<16x128xf32> to vector<2x8x128xf32>
    %cst_18 = arith.constant dense<0.000000e+00> : vector<8x128xf32>
    %29 = vector.multi_reduction <add>, %28, %cst_18 [0] : vector<2x8x128xf32> to vector<8x128xf32>
    %30 = vector.shape_cast %29 : vector<8x128xf32> to vector<1x8x128xf32>
    %31 = arith.addf %27, %30 : vector<1x8x128xf32>
    %c0_19 = arith.constant 0 : index
    %c0_20 = arith.constant 0 : index
    %c0_21 = arith.constant 0 : index
    %32 = vector.load %arg6[%c0_19, %c0_20, %c0_21] : memref<1x8x128xf32, #tpu.memory_space<vmem>>, vector<1x8x128xf32>
    tpu.vector_store %arg6[%c0_19, %c0_20, %c0_21], %31 {strides = array<i32>} : memref<1x8x128xf32, #tpu.memory_space<vmem>>, vector<1x8x128xf32>,
    return
  }
  func.func @transform_0(%arg0: i32, %arg1: i32) -> (i32, i32) {
    %c1_i32 = arith.constant 1 : i32
    %0 = arith.muli %arg0, %c1_i32 : i32
    %1 = arith.addi %0, %arg1 : i32
    %c0_i32 = arith.constant 0 : i32
    %2 = arith.minsi %1, %c0_i32 : i32
    %c0_i32_0 = arith.constant 0 : i32
    %c0_i32_1 = arith.constant 0 : i32
    return %2, %c0_i32_0 : i32, i32
  }
  func.func @transform_1(%arg0: i32, %arg1: i32) -> (i32, i32) {
    %c1_i32 = arith.constant 1 : i32
    %0 = arith.muli %arg0, %c1_i32 : i32
    %1 = arith.addi %0, %arg1 : i32
    %c0_i32 = arith.constant 0 : i32
    %2 = arith.minsi %1, %c0_i32 : i32
    %c0_i32_0 = arith.constant 0 : i32
    %c0_i32_1 = arith.constant 0 : i32
    return %2, %c0_i32_0 : i32, i32
  }
  func.func @transform_2(%arg0: i32, %arg1: i32) -> (i32, i32) {
    %c1_i32 = arith.constant 1 : i32
    %0 = arith.muli %arg0, %c1_i32 : i32
    %1 = arith.addi %0, %arg1 : i32
    %c0_i32 = arith.constant 0 : i32
    %2 = arith.minsi %1, %c0_i32 : i32
    %c0_i32_0 = arith.constant 0 : i32
    %c0_i32_1 = arith.constant 0 : i32
    return %2, %c0_i32_0 : i32, i32
  }
  func.func @transform_3(%arg0: i32, %arg1: i32) -> (i32, i32, i32) {
    %c0_i32 = arith.constant 0 : i32
    %c0_i32_0 = arith.constant 0 : i32
    %c0_i32_1 = arith.constant 0 : i32
    return %arg0, %c0_i32, %c0_i32_0 : i32, i32, i32
  }
  func.func @transform_4(%arg0: i32, %arg1: i32) -> (i32, i32, i32) {
    %c0_i32 = arith.constant 0 : i32
    %c0_i32_0 = arith.constant 0 : i32
    %c0_i32_1 = arith.constant 0 : i32
    return %arg0, %c0_i32, %c0_i32_0 : i32, i32, i32
  }
}

</mosaic_0001>

<llo_original>
// kernel: l1_loss.1
$region0: #{l1_loss.1}
  #allocation0 [shape = 'u32[]', space=smem, size = 0x4, offset = 0x4, fixed_abs, tag = 'smem constant byte address 0x4 - core index']
  #allocation1 [shape = 'u32[144,128]{1,0:T(1,128)}', space=vmem, size = 0x12000, scoped, tag = 'internal scratch']
  %s0 = inlined_call_operand.vmem [shape: f32[16,128], index: 0, kind: input, shape index: {}]
  %s1 = inlined_call_operand.vmem [shape: f32[16,128], index: 1, kind: input, shape index: {}]
  %s2 = inlined_call_operand.vmem [shape: f32[16,128], index: 2, kind: input, shape index: {}]
  %s3 = inlined_call_operand.vmem [shape: f32[1,8,128], index: 3, kind: output, shape index: {0}]
  %s4 = inlined_call_operand.vmem [shape: f32[1,8,128], index: 4, kind: output, shape index: {1}]
  %5 = xla_tuple %s3, %s4
  %s6 = sld [smem:[#allocation0]]
  $region34: #{l1_loss.1} parent=0
    _
  %s8 = ssub.s32 1, %s6
  %s9 = scalar_select 0, %s8, %s6
  // Predicated region
  $region2: #{l1_loss.1} parent=0 // pred_check
    _
  $region3: #{l1_loss.1} parent=0 // pred_check_branch
    %11 = sbr.rel (0) target = $region5
  $region4: #{l1_loss.1} parent=0 // pred_region
    %s12 = sadd.s32 0, 0
    %p13 = scmp.lt.s32.totalorder %s12, 0
    %s14 = scalar_select %p13, %s12, 0
    %s15 = smul.u32 2, %s14
    %p16 = scmp.lt.s32.totalorder %s15, 1
    %s17 = scalar_select %p16, %s15, 1
    %s18 = smul.addr %s17, 8
    %s19 = scalar_lea.vmem %s0, %s18
    %s20 = sadd.s32 0, 0
    %p21 = scmp.lt.s32.totalorder %s20, 0
    %s22 = scalar_select %p21, %s20, 0
    %s23 = smul.u32 2, %s22
  $region5: #{l1_loss.1} parent=0 // pred_fallthru
    _
  // Predicated region
  $region6: #{l1_loss.1} parent=0 // pred_check
    _
  $region7: #{l1_loss.1} parent=0 // pred_check_branch
    %25 = sbr.rel (0) target = $region9
  $region8: #{l1_loss.1} parent=0 // pred_region
    %s26 = sadd.s32 0, 0
    %p27 = scmp.lt.s32.totalorder %s26, 0
    %s28 = scalar_select %p27, %s26, 0
    %s29 = smul.u32 2, %s28
    %p30 = scmp.lt.s32.totalorder %s29, 1
    %s31 = scalar_select %p30, %s29, 1
    %s32 = smul.addr %s31, 8
    %s33 = scalar_lea.vmem %s1, %s32
    %s34 = sadd.s32 0, 0
    %p35 = scmp.lt.s32.totalorder %s34, 0
    %s36 = scalar_select %p35, %s34, 0
    %s37 = smul.u32 2, %s36
  $region9: #{l1_loss.1} parent=0 // pred_fallthru
    _
  // Predicated region
  $region10: #{l1_loss.1} parent=0 // pred_check
    _
  $region11: #{l1_loss.1} parent=0 // pred_check_branch
    %39 = sbr.rel (0) target = $region13
  $region12: #{l1_loss.1} parent=0 // pred_region
    %s40 = sadd.s32 0, 0
    %p41 = scmp.lt.s32.totalorder %s40, 0
    %s42 = scalar_select %p41, %s40, 0
    %s43 = smul.u32 2, %s42
    %p44 = scmp.lt.s32.totalorder %s43, 1
    %s45 = scalar_select %p44, %s43, 1
    %s46 = smul.addr %s45, 8
    %s47 = scalar_lea.vmem %s2, %s46
    %s48 = sadd.s32 0, 0
    %p49 = scmp.lt.s32.totalorder %s48, 0
    %s50 = scalar_select %p49, %s48, 0
    %s51 = smul.u32 2, %s50
  $region13: #{l1_loss.1} parent=0 // pred_fallthru
    _
  %s52 = sadd.s32 0, 0
  %p53 = scmp.lt.s32.totalorder %s52, 0
  %s54 = scalar_select %p53, %s52, 0
  %s55 = smul.u32 2, %s54
  %p56 = scmp.lt.s32.totalorder %s55, 1
  %s57 = scalar_select %p56, %s55, 1
  %s58 = smul.addr %s57, 8
  %s59 = scalar_lea.vmem %s0, %s58
  %s60 = sadd.s32 0, 0
  %p61 = scmp.lt.s32.totalorder %s60, 0
  %s62 = scalar_select %p61, %s60, 0
  %s63 = smul.u32 2, %s62
  %p64 = scmp.lt.s32.totalorder %s63, 1
  %s65 = scalar_select %p64, %s63, 1
  %s66 = smul.addr %s65, 8
  %s67 = scalar_lea.vmem %s1, %s66
  %s68 = sadd.s32 0, 0
  %p69 = scmp.lt.s32.totalorder %s68, 0
  %s70 = scalar_select %p69, %s68, 0
  %s71 = smul.u32 2, %s70
  %p72 = scmp.lt.s32.totalorder %s71, 1
  %s73 = scalar_select %p72, %s71, 1
  %s74 = smul.addr %s73, 8
  %s75 = scalar_lea.vmem %s2, %s74
  %s76 = sadd.s32 0, 0
  %p77 = scmp.lt.s32.totalorder %s76, 0
  %s78 = scalar_select %p77, %s76, 0
  %s79 = smul.u32 2, %s78
  %p80 = scmp.lt.s32.totalorder %s79, 1
  %s81 = scalar_select %p80, %s79, 1
  %s82 = smul.addr %s81, 8
  %s83 = scalar_lea.vmem %s0, %s82
  %s84 = sadd.s32 0, 0
  %p85 = scmp.lt.s32.totalorder %s84, 0
  %s86 = scalar_select %p85, %s84, 0
  %s87 = smul.u32 2, %s86
  %s88 = sadd.s32 0, 0
  %p89 = scmp.lt.s32.totalorder %s88, 0
  %s90 = scalar_select %p89, %s88, 0
  %s91 = smul.u32 2, %s90
  %p92 = scmp.lt.s32.totalorder %s91, 1
  %s93 = scalar_select %p92, %s91, 1
  %s94 = smul.addr %s93, 8
  %s95 = scalar_lea.vmem %s1, %s94
  %s96 = sadd.s32 0, 0
  %p97 = scmp.lt.s32.totalorder %s96, 0
  %s98 = scalar_select %p97, %s96, 0
  %s99 = smul.u32 2, %s98
  %s100 = sadd.s32 0, 0
  %p101 = scmp.lt.s32.totalorder %s100, 0
  %s102 = scalar_select %p101, %s100, 0
  %s103 = smul.u32 2, %s102
  %p104 = scmp.lt.s32.totalorder %s103, 1
  %s105 = scalar_select %p104, %s103, 1
  %s106 = smul.addr %s105, 8
  %s107 = scalar_lea.vmem %s2, %s106
  %s108 = sadd.s32 0, 0
  %p109 = scmp.lt.s32.totalorder %s108, 0
  %s110 = scalar_select %p109, %s108, 0
  %s111 = smul.u32 2, %s110
  %p112 = scmp.eq.s32.totalorder 0, 0
  // Predicated region
  $region14: #{l1_loss.1} parent=0 // pred_check
    %p113 = pneg %p112
  $region15: #{l1_loss.1} parent=0 // pred_check_branch
    %115 = sbr.rel (%p113) target = $region17
  $region16: #{l1_loss.1} parent=0 // pred_region
    %116 = vst [vmem:[%s3] sm:$0xff] 0.0
    %117 = vst [vmem:[%s4] sm:$0xff] 0.0
  $region17: #{l1_loss.1} parent=0 // pred_fallthru
    _
  %v118 = vld [vmem:[%s83] sm:$0xff]
  %v119 = vld [vmem:[%s83 + $0x8] sm:$0xff]
  %v120 = vld [vmem:[%s95] sm:$0xff]
  %v121 = vld [vmem:[%s95 + $0x8] sm:$0xff]
  %v122 = vld [vmem:[%s107] sm:$0xff]
  %v123 = vld [vmem:[%s107 + $0x8] sm:$0xff]
  %s124 = sadd.s32 0, 0
  %s125 = smul.u32 %s124, 16
  %v126 = vlaneseq
  %v127 = vshrl.u32 %v126, 7
  %v128 = vadd.s32 %v127, 8
  %v129 = vstv %s125
  %v130 = vadd.s32 %v129, %v127
  %v131 = vadd.s32 %v129, %v128
  %vm132 = vcmp.lt.s32.totalorder %v130, 16
  %vm133 = vcmp.lt.s32.totalorder %v131, 16
  %v134 = vsub.f32 %v118, %v120
  %v135 = vsub.f32 %v119, %v121
  %v136 = vand.u32 2147483647, %v134
  %v137 = vand.u32 2147483647, %v135
  %v138 = vmul.f32 %v136, %v122
  %v139 = vmul.f32 %v137, %v123
  %v140 = vsel %vm132, %v138, 0.0
  %v141 = vsel %vm133, %v139, 0.0
  %v142 = vsel %vm132, %v122, 0.0
  %v143 = vsel %vm133, %v123, 0.0
  %v144 = vld [vmem:[%s3] sm:$0xff]
  %v145 = vadd.f32 %v140, %v141
  %v146 = vadd.f32 %v144, %v145
  %147 = vst [vmem:[%s3] sm:$0xff] %v146
  %v148 = vld [vmem:[%s4] sm:$0xff]
  %v149 = vadd.f32 %v142, %v143
  %v150 = vadd.f32 %v148, %v149
  %151 = vst [vmem:[%s4] sm:$0xff] %v150
  // Predicated region
  $region18: #{l1_loss.1} parent=0 // pred_check
    _
  $region19: #{l1_loss.1} parent=0 // pred_check_branch
    %153 = sbr.rel (0) target = $region21
  $region20: #{l1_loss.1} parent=0 // pred_region
    _
  $region21: #{l1_loss.1} parent=0 // pred_fallthru
    _
  // Predicated region
  $region22: #{l1_loss.1} parent=0 // pred_check
    _
  $region23: #{l1_loss.1} parent=0 // pred_check_branch
    %155 = sbr.rel (0) target = $region25
  $region24: #{l1_loss.1} parent=0 // pred_region
    _
  $region25: #{l1_loss.1} parent=0 // pred_fallthru
    _
  // Predicated region
  $region26: #{l1_loss.1} parent=0 // pred_check
    _
  $region27: #{l1_loss.1} parent=0 // pred_check_branch
    %157 = sbr.rel (0) target = $region29
  $region28: #{l1_loss.1} parent=0 // pred_region
    _
  $region29: #{l1_loss.1} parent=0 // pred_fallthru
    _
  // Predicated region
  $region30: #{l1_loss.1} parent=0 // pred_check
    _
  $region31: #{l1_loss.1} parent=0 // pred_check_branch
    %159 = sbr.rel (0) target = $region33
  $region32: #{l1_loss.1} parent=0 // pred_region
    _
  $region33: #{l1_loss.1} parent=0 // pred_fallthru
    _

</llo_original>
